<compile_context>
chip_gen: v7x
topology: tpu7x:2x2x1
jax: 0.10.0
libtpu: 0.0.40
codegen_flags: <defaults>
</compile_context>

<pallas_src>
import functools

import numpy as np
import jax
import jax.numpy as jnp
from jax import lax
from jax.experimental import pallas as pl
from jax.experimental.pallas import tpu as pltpu


def _round_up(x, m):
    return ((x + m - 1) // m) * m


def _bn_conv1d_kernel(x_ref, xh_ref, w_ref, g_ref, b_ref, o_ref,
                      sum_ref, sumsq_ref, scale_ref, shift_ref,
                      *, tap_offsets, tl, l_out, m_true, eps, activation):
    """Grid = (pass, batch, l_tile).

    Layout (channels on sublanes, output positions on lanes):
      x_ref  : (c_rows, TL)      input tile              xh_ref : (c_rows, HALO) right halo
      w_ref  : (K_eff, C_out_pad, c_rows)                g_ref/b_ref : (C_out_pad, 1)
      o_ref  : (C_out_pad, TL)
      sum_ref/sumsq_ref : (C_out_pad, 128) lane-chunk accumulators
      scale_ref/shift_ref : (C_out_pad, 1) folded BN affine
    """
    p = pl.program_id(0)   # pass: 0 = statistics, 1 = normalize
    b = pl.program_id(1)   # batch element
    t = pl.program_id(2)   # L tile

    @pl.when((p == 0) & (b == 0) & (t == 0))
    def _init():
        sum_ref[...] = jnp.zeros_like(sum_ref)
        sumsq_ref[...] = jnp.zeros_like(sumsq_ref)

    # ---- Conv1d tile: sum of K small MXU matmuls (no im2col duplication) -------------
    if max(tap_offsets) > 0:
        xa = jnp.concatenate([x_ref[...], xh_ref[...]], axis=-1)   # (c_rows, TL+HALO)
    else:
        xa = x_ref[...]
    conv = None
    for kk, off in enumerate(tap_offsets):
        x_tap = lax.slice_in_dim(xa, off, off + tl, axis=1)        # (c_rows, TL)
        part = jnp.dot(w_ref[kk], x_tap, preferred_element_type=jnp.float32)
        conv = part if conv is None else conv + part               # (C_out_pad, TL) f32
    if activation == "relu":
        conv = jnp.maximum(conv, 0.0)

    @pl.when(p == 0)
    def _accumulate():
        # Mask columns past the true L_out of this tile (the halo / alignment padding can
        # overlap real data there); padded channels are already zero via zero weights.
        valid = l_out - t * tl
        col = lax.broadcasted_iota(jnp.int32, conv.shape, 1)
        cm = jnp.where(col < valid, conv, 0.0)
        # Lane-chunk accumulation keeps the per-tile reduction on the VPU; the single
        # 128->1 cross-lane (XLU) reduce happens once in _finalize_stats.
        chunks = [lax.slice_in_dim(cm, j * 128, (j + 1) * 128, axis=1)
                  for j in range(tl // 128)]
        s_part = chunks[0]
        q_part = chunks[0] * chunks[0]
        for c in chunks[1:]:
            s_part = s_part + c
            q_part = q_part + c * c
        sum_ref[...] += s_part
        sumsq_ref[...] += q_part

    @pl.when((p == 1) & (b == 0) & (t == 0))
    def _finalize_stats():
        inv_m = 1.0 / m_true
        mean = jnp.sum(sum_ref[...], axis=1, keepdims=True) * inv_m     # (C_out_pad, 1)
        ex2 = jnp.sum(sumsq_ref[...], axis=1, keepdims=True) * inv_m
        # TODO(synk): E[x^2]-E[x]^2 can cancel when mean^2 >> var (large M after ReLU);
        # switch to a shifted / Welford accumulation if that precision regime matters.
        var = jnp.maximum(ex2 - mean * mean, 0.0)
        inv_std = lax.rsqrt(var + eps)
        scale = inv_std * g_ref[...]
        scale_ref[...] = scale
        shift_ref[...] = b_ref[...] - mean * scale

    @pl.when(p == 1)
    def _normalize():
        # Single FMA per element; padded channels get scale=shift=0 -> 0 output rows.
        o_ref[...] = (conv * scale_ref[...] + shift_ref[...]).astype(o_ref.dtype)


@functools.partial(
    jax.jit,
    static_argnames=("stride", "padding", "eps", "activation",
                     "compute_dtype", "out_dtype"))
def batch_norm_conv1d(x, weight, gamma, beta, *, stride, padding, eps=1e-3,
                      activation=None, compute_dtype=jnp.float32, out_dtype=None):
    """x: (N, C_in, L).  weight: (C_out, C_in, K).  Returns (N, C_out, L_out)."""
    if activation not in (None, "relu"):
        raise NotImplementedError("only activation in {None, 'relu'} is supported")
    compute_dtype = np.dtype(compute_dtype)
    out_dtype = np.dtype(out_dtype) if out_dtype is not None else np.dtype(np.float32)

    n, c_in, length = x.shape
    c_out, c_in_w, k = weight.shape
    assert c_in == c_in_w
    l_out = (length + 2 * padding - k) // stride + 1
    m = n * l_out

    c_out_pad = _round_up(c_out, 8)        # channels live on sublanes (8-granule, not 128)

    # ---- tap layout (replaces the K-fold im2col of the previous version) --------------
    if stride == 1:
        tap_offsets = tuple(range(k))
        c_rows, k_eff = c_in, k
        w_k = weight.transpose(2, 0, 1)                        # (K, C_out, C_in)
        x_rows = x                                             # conv pad folded in below
        left_pad, base_len = padding, length
        halo = _round_up(max(k - 1, 1), 128)
    else:
        # Phase-decomposed taps stacked on the channel axis: duplication K/stride <= Kx.
        tap_offsets = (0,)
        c_rows, k_eff = c_in * k, 1
        x_cp = jnp.pad(x, ((0, 0), (0, 0), (padding, padding)))
        taps = [x_cp[:, :, kk: kk + (l_out - 1) * stride + 1: stride] for kk in range(k)]
        x_rows = jnp.concatenate(taps, axis=1)                 # (N, K*C_in, L_out)
        w_k = weight.transpose(0, 2, 1).reshape(1, c_out, k * c_in)
        left_pad, base_len = 0, l_out
        halo = 128

    esz_in, esz_out = compute_dtype.itemsize, out_dtype.itemsize

    # ---- generation-aware VMEM budget and L-tile size ---------------------------------
    try:
        vmem_phys = int(pltpu.get_tpu_info().vmem_capacity_bytes)
    except Exception:           # no query available: assume the smallest (v7x, 64 MiB)
        vmem_phys = 64 * 1024 * 1024
    vmem_limit = min((vmem_phys * 3) // 4, 96 * 1024 * 1024)   # ~48 MiB v7x, 96 MiB v5e/v6e

    fixed = (2 * c_rows * halo * esz_in                        # halo (double buffered)
             + 2 * k_eff * c_out_pad * c_rows * esz_in         # weights (2 resident bufs)
             + 4 * c_out_pad * 4                               # gamma/beta
             + 2 * c_out_pad * (128 + 1) * 4                   # stats + scale/shift scratch
             + (1 << 20))                                      # mosaic internal slack
    per_col = 2 * (c_rows * esz_in + c_out_pad * esz_out)      # 2 input + 2 output buffers
    budget = (vmem_limit * 7) // 10 - fixed
    tl = max(128, budget // max(per_col, 1))
    tl = min(tl, 8192, _round_up(l_out, 128))                  # no point tiling past data
    tl = max(halo, (tl // halo) * halo)                        # multiple of 128 and halo

    num_l_tiles = pl.cdiv(l_out, tl)
    l_out_pad = num_l_tiles * tl
    l_src_pad = l_out_pad + halo                               # main tiles + right halo
    halo_blocks = tl // halo

    # Zero padding: zero input columns give conv == 0 there, and the in-kernel mask drops
    # padded output columns from the statistics (divide by the true M = N * L_out).
    x_src = jnp.pad(x_rows, ((0, 0), (0, 0),
                             (left_pad, l_src_pad - base_len - left_pad)))
    x_src = x_src.astype(compute_dtype)
    w_k = jnp.pad(w_k, ((0, 0), (0, c_out_pad - c_out), (0, 0))).astype(compute_dtype)
    g2 = jnp.pad(gamma.astype(jnp.float32), (0, c_out_pad - c_out)).reshape(c_out_pad, 1)
    b2 = jnp.pad(beta.astype(jnp.float32), (0, c_out_pad - c_out)).reshape(c_out_pad, 1)

    kernel = functools.partial(
        _bn_conv1d_kernel, tap_offsets=tap_offsets, tl=tl, l_out=l_out,
        m_true=float(m), eps=float(eps), activation=activation)

    out = pl.pallas_call(
        kernel,
        out_shape=jax.ShapeDtypeStruct((n, c_out_pad, l_out_pad), out_dtype),
        grid_spec=pltpu.PrefetchScalarGridSpec(
            num_scalar_prefetch=0,
            grid=(2, n, num_l_tiles),                          # (pass, batch, l_tile)
            in_specs=[
                # main input tile
                pl.BlockSpec((None, c_rows, tl), lambda p, b, t: (b, 0, t)),
                # right halo of the SAME array (taps kk > 0 peek K-1 columns ahead)
                pl.BlockSpec((None, c_rows, halo),
                             lambda p, b, t: (b, 0, (t + 1) * halo_blocks)),
                # constant blocks (re-DMA skipped since the block index never changes)
                pl.BlockSpec((k_eff, c_out_pad, c_rows), lambda p, b, t: (0, 0, 0)),
                pl.BlockSpec((c_out_pad, 1), lambda p, b, t: (0, 0)),
                pl.BlockSpec((c_out_pad, 1), lambda p, b, t: (0, 0)),
            ],
            # Pass 0 never writes the output; park it on block (0,0,0) so nothing is
            # flushed to HBM until pass 1 has written it (relies on "writeback only on
            # block-index change" semantics, same trick as the validated prior version).
            out_specs=pl.BlockSpec((None, c_out_pad, tl),
                                   lambda p, b, t: (p * b, 0, p * t)),
            scratch_shapes=[
                pltpu.VMEM((c_out_pad, 128), jnp.float32),     # lane-chunk running sum
                pltpu.VMEM((c_out_pad, 128), jnp.float32),     # lane-chunk running sum sq
                pltpu.VMEM((c_out_pad, 1), jnp.float32),       # folded scale
                pltpu.VMEM((c_out_pad, 1), jnp.float32),       # folded shift
            ]),
        compiler_params=pltpu.CompilerParams(
            # All axes "arbitrary": the pass axis is sequential by construction and the
            # (batch, l_tile) axes carry the running (sum, sumsq) accumulators.
            # TODO(synk): v7x dual-TensorCore split + partial-stats combine.
            dimension_semantics=("arbitrary", "arbitrary", "arbitrary"),
            vmem_limit_bytes=int(vmem_limit)),
    )(x_src, x_src, w_k, g2, b2)

    # Channel-major output already: just drop padding -- no transpose, no reshape.
    return out[:, :c_out, :l_out]


def _reference(x, weight, gamma, beta, *, stride, padding, eps=1e-3, activation=None):
    y = lax.conv_general_dilated(
        x, weight, window_strides=(stride,), padding=[(padding, padding)],
        dimension_numbers=("NCH", "OIH", "NCH"))
    if activation == "relu":
        y = jnp.maximum(y, 0.0)
    mean = jnp.mean(y, axis=(0, 2), keepdims=True)
    var = jnp.mean((y - mean) ** 2, axis=(0, 2), keepdims=True)
    y = (y - mean) * lax.rsqrt(var + eps)
    return y * gamma.reshape(1, -1, 1) + beta.reshape(1, -1, 1)


if __name__ == "__main__":
    in_channels, out_channels, kernel_size = 4, 8, 3

    key = jax.random.PRNGKey(0)
    kx, kw, kg, kb = jax.random.split(key, 4)
    N, L = 2, 16
    x = jax.random.normal(kx, (N, in_channels, L), dtype=jnp.float32)
    weight = jax.random.normal(
        kw, (out_channels, in_channels, kernel_size), dtype=jnp.float32) * 0.1

    # Config 1: stride=1, padding=1, no activation, PyTorch BatchNorm1d init.
    gamma = jnp.ones((out_channels,), dtype=jnp.float32)
    beta = jnp.zeros((out_channels,), dtype=jnp.float32)
    out = batch_norm_conv1d(x, weight, gamma, beta, stride=1, padding=1,
                            eps=1e-3, activation=None)
    out = jax.block_until_ready(out)
    ref = _reference(x, weight, gamma, beta, stride=1, padding=1, eps=1e-3,
                     activation=None)
    assert out.shape == (N, out_channels, 16)
    assert jnp.allclose(out, ref, atol=2e-4, rtol=2e-4), \
        float(jnp.max(jnp.abs(out - ref)))

    # Config 2: strided conv + ReLU + non-trivial affine (exercises the stride>1 path).
    gamma2 = 1.0 + 0.1 * jax.random.normal(kg, (out_channels,), dtype=jnp.float32)
    beta2 = 0.1 * jax.random.normal(kb, (out_channels,), dtype=jnp.float32)
    out2 = batch_norm_conv1d(x, weight, gamma2, beta2, stride=2, padding=1,
                             eps=1e-3, activation="relu")
    out2 = jax.block_until_ready(out2)
    ref2 = _reference(x, weight, gamma2, beta2, stride=2, padding=1, eps=1e-3,
                      activation="relu")
    l_out2 = (L + 2 * 1 - kernel_size) // 2 + 1
    assert out2.shape == (N, out_channels, l_out2)
    assert jnp.allclose(out2, ref2, atol=2e-4, rtol=2e-4), \
        float(jnp.max(jnp.abs(out2 - ref2)))

    print("KERNEL_OK")
</pallas_src>

<mosaic_0001>
module attributes {stable_mosaic.version = 11 : i64} {
  func.func @_bn_conv1d_kernel(%arg0: i32, %arg1: i32, %arg2: i32, %arg3: memref<1x4x128xf32, #tpu.memory_space<vmem>>, %arg4: memref<1x4x128xf32, #tpu.memory_space<vmem>>, %arg5: memref<3x8x4xf32, #tpu.memory_space<vmem>>, %arg6: memref<8x1xf32, #tpu.memory_space<vmem>>, %arg7: memref<8x1xf32, #tpu.memory_space<vmem>>, %arg8: memref<1x8x128xf32, #tpu.memory_space<vmem>>, %arg9: memref<8x128xf32, #tpu.memory_space<vmem>>, %arg10: memref<8x128xf32, #tpu.memory_space<vmem>>, %arg11: memref<8x1xf32, #tpu.memory_space<vmem>>, %arg12: memref<8x1xf32, #tpu.memory_space<vmem>>) attributes {dimension_semantics = [#tpu.dimension_semantics<arbitrary>, #tpu.dimension_semantics<arbitrary>, #tpu.dimension_semantics<arbitrary>], iteration_bounds = array<i64: 2, 2, 1>, scalar_prefetch = 0 : i64, scratch_operands = 4 : i64, tpu.core_type = #tpu.core_type<tc>, window_params = [{transform_indices = @transform_0, window_bounds = array<i64: 1, 4, 128>}, {transform_indices = @transform_1, window_bounds = array<i64: 1, 4, 128>}, {pipeline_mode = #tpu.pipeline_mode<synchronous>, transform_indices = @transform_2, window_bounds = array<i64: 3, 8, 4>}, {pipeline_mode = #tpu.pipeline_mode<synchronous>, transform_indices = @transform_3, window_bounds = array<i64: 8, 1>}, {pipeline_mode = #tpu.pipeline_mode<synchronous>, transform_indices = @transform_4, window_bounds = array<i64: 8, 1>}, {transform_indices = @transform_5, window_bounds = array<i64: 1, 8, 128>}]} {
    %c0_i32 = arith.constant 0 : i32
    %0 = arith.cmpi eq, %arg0, %c0_i32 : i32
    %c0_i32_0 = arith.constant 0 : i32
    %1 = arith.cmpi eq, %arg1, %c0_i32_0 : i32
    %2 = arith.andi %0, %1 : i1
    %c0_i32_1 = arith.constant 0 : i32
    %3 = arith.cmpi eq, %arg2, %c0_i32_1 : i32
    %4 = arith.andi %2, %3 : i1
    %5 = arith.extui %4 : i1 to i32
    %c0_i32_2 = arith.constant 0 : i32
    %6 = arith.cmpi ne, %5, %c0_i32_2 : i32
    scf.if %6 {
      %cst_24 = arith.constant 0.000000e+00 : f32
      %39 = vector.broadcast %cst_24 : f32 to vector<8x128xf32>
      %c0_25 = arith.constant 0 : index
      %c0_26 = arith.constant 0 : index
      %40 = vector.load %arg9[%c0_25, %c0_26] : memref<8x128xf32, #tpu.memory_space<vmem>>, vector<8x128xf32>
      tpu.vector_store %arg9[%c0_25, %c0_26], %39 {strides = array<i32>} : memref<8x128xf32, #tpu.memory_space<vmem>>, vector<8x128xf32>,
      %cst_27 = arith.constant 0.000000e+00 : f32
      %41 = vector.broadcast %cst_27 : f32 to vector<8x128xf32>
      %c0_28 = arith.constant 0 : index
      %c0_29 = arith.constant 0 : index
      %42 = vector.load %arg10[%c0_28, %c0_29] : memref<8x128xf32, #tpu.memory_space<vmem>>, vector<8x128xf32>
      tpu.vector_store %arg10[%c0_28, %c0_29], %41 {strides = array<i32>} : memref<8x128xf32, #tpu.memory_space<vmem>>, vector<8x128xf32>,
    } else {
    }
    %c0 = arith.constant 0 : index
    %c0_3 = arith.constant 0 : index
    %c0_4 = arith.constant 0 : index
    %7 = vector.load %arg3[%c0, %c0_3, %c0_4] : memref<1x4x128xf32, #tpu.memory_space<vmem>>, vector<1x4x128xf32>
    %8 = vector.shape_cast %7 : vector<1x4x128xf32> to vector<4x128xf32>
    %c0_5 = arith.constant 0 : index
    %c0_6 = arith.constant 0 : index
    %c0_7 = arith.constant 0 : index
    %9 = vector.load %arg4[%c0_5, %c0_6, %c0_7] : memref<1x4x128xf32, #tpu.memory_space<vmem>>, vector<1x4x128xf32>
    %10 = vector.shape_cast %9 : vector<1x4x128xf32> to vector<4x128xf32>
    %11 = tpu.concatenate %8, %10 in 1 : vector<4x128xf32>, vector<4x128xf32> -> vector<4x256xf32>
    %12 = vector.extract_strided_slice %11 {offsets = [0, 0], sizes = [4, 128], strides = [1, 1]} : vector<4x256xf32> to vector<4x128xf32>
    %c0_8 = arith.constant 0 : index
    %c0_9 = arith.constant 0 : index
    %c0_10 = arith.constant 0 : index
    %13 = vector.load %arg5[%c0_8, %c0_9, %c0_10] : memref<3x8x4xf32, #tpu.memory_space<vmem>>, vector<1x8x4xf32>
    %14 = vector.shape_cast %13 : vector<1x8x4xf32> to vector<8x4xf32>
    %cst = arith.constant dense<0.000000e+00> : vector<8x128xf32>
    %15 = tpu.matmul %14, %12, %cst {dimension_numbers = #tpu.dot_dimension_numbers<[1], [0], [0], [1], [0, 0, 1, 1], [], []>} : vector<8x4xf32>, vector<4x128xf32>, vector<8x128xf32> -> vector<8x128xf32>
    %16 = vector.extract_strided_slice %11 {offsets = [0, 1], sizes = [4, 128], strides = [1, 1]} : vector<4x256xf32> to vector<4x128xf32>
    %c1 = arith.constant 1 : index
    %c0_11 = arith.constant 0 : index
    %c0_12 = arith.constant 0 : index
    %17 = vector.load %arg5[%c1, %c0_11, %c0_12] : memref<3x8x4xf32, #tpu.memory_space<vmem>>, vector<1x8x4xf32>
    %18 = vector.shape_cast %17 : vector<1x8x4xf32> to vector<8x4xf32>
    %cst_13 = arith.constant dense<0.000000e+00> : vector<8x128xf32>
    %19 = tpu.matmul %18, %16, %cst_13 {dimension_numbers = #tpu.dot_dimension_numbers<[1], [0], [0], [1], [0, 0, 1, 1], [], []>} : vector<8x4xf32>, vector<4x128xf32>, vector<8x128xf32> -> vector<8x128xf32>
    %20 = arith.addf %15, %19 : vector<8x128xf32>
    %21 = vector.extract_strided_slice %11 {offsets = [0, 2], sizes = [4, 128], strides = [1, 1]} : vector<4x256xf32> to vector<4x128xf32>
    %c2 = arith.constant 2 : index
    %c0_14 = arith.constant 0 : index
    %c0_15 = arith.constant 0 : index
    %22 = vector.load %arg5[%c2, %c0_14, %c0_15] : memref<3x8x4xf32, #tpu.memory_space<vmem>>, vector<1x8x4xf32>
    %23 = vector.shape_cast %22 : vector<1x8x4xf32> to vector<8x4xf32>
    %cst_16 = arith.constant dense<0.000000e+00> : vector<8x128xf32>
    %24 = tpu.matmul %23, %21, %cst_16 {dimension_numbers = #tpu.dot_dimension_numbers<[1], [0], [0], [1], [0, 0, 1, 1], [], []>} : vector<8x4xf32>, vector<4x128xf32>, vector<8x128xf32> -> vector<8x128xf32>
    %25 = arith.addf %20, %24 : vector<8x128xf32>
    %c0_i32_17 = arith.constant 0 : i32
    %26 = arith.cmpi eq, %arg0, %c0_i32_17 : i32
    %27 = arith.extui %26 : i1 to i32
    %c0_i32_18 = arith.constant 0 : i32
    %28 = arith.cmpi ne, %27, %c0_i32_18 : i32
    scf.if %28 {
      %c128_i32 = arith.constant 128 : i32
      %39 = arith.muli %arg2, %c128_i32 : i32
      %c16_i32 = arith.constant 16 : i32
      %40 = arith.subi %c16_i32, %39 : i32
      %41 = tpu.iota {dimensions = array<i32: 1>} : vector<8x128xi32>
      %42 = vector.broadcast %40 : i32 to vector<8x128xi32>
      %43 = arith.cmpi slt, %41, %42 : vector<8x128xi32>
      %cst_24 = arith.constant 0.000000e+00 : f32
      %44 = vector.broadcast %cst_24 : f32 to vector<8x128xf32>
      %45 = arith.select %43, %25, %44 : vector<8x128xi1>, vector<8x128xf32>
      %46 = vector.extract_strided_slice %45 {offsets = [0, 0], sizes = [8, 128], strides = [1, 1]} : vector<8x128xf32> to vector<8x128xf32>
      %47 = arith.mulf %46, %46 : vector<8x128xf32>
      %c0_25 = arith.constant 0 : index
      %c0_26 = arith.constant 0 : index
      %48 = vector.load %arg9[%c0_25, %c0_26] : memref<8x128xf32, #tpu.memory_space<vmem>>, vector<8x128xf32>
      %49 = arith.addf %48, %46 : vector<8x128xf32>
      %c0_27 = arith.constant 0 : index
      %c0_28 = arith.constant 0 : index
      %50 = vector.load %arg9[%c0_27, %c0_28] : memref<8x128xf32, #tpu.memory_space<vmem>>, vector<8x128xf32>
      tpu.vector_store %arg9[%c0_27, %c0_28], %49 {strides = array<i32>} : memref<8x128xf32, #tpu.memory_space<vmem>>, vector<8x128xf32>,
      %c0_29 = arith.constant 0 : index
      %c0_30 = arith.constant 0 : index
      %51 = vector.load %arg10[%c0_29, %c0_30] : memref<8x128xf32, #tpu.memory_space<vmem>>, vector<8x128xf32>
      %52 = arith.addf %51, %47 : vector<8x128xf32>
      %c0_31 = arith.constant 0 : index
      %c0_32 = arith.constant 0 : index
      %53 = vector.load %arg10[%c0_31, %c0_32] : memref<8x128xf32, #tpu.memory_space<vmem>>, vector<8x128xf32>
      tpu.vector_store %arg10[%c0_31, %c0_32], %52 {strides = array<i32>} : memref<8x128xf32, #tpu.memory_space<vmem>>, vector<8x128xf32>,
    } else {
    }
    %c1_i32 = arith.constant 1 : i32
    %29 = arith.cmpi eq, %arg0, %c1_i32 : i32
    %c0_i32_19 = arith.constant 0 : i32
    %30 = arith.cmpi eq, %arg1, %c0_i32_19 : i32
    %31 = arith.andi %29, %30 : i1
    %c0_i32_20 = arith.constant 0 : i32
    %32 = arith.cmpi eq, %arg2, %c0_i32_20 : i32
    %33 = arith.andi %31, %32 : i1
    %34 = arith.extui %33 : i1 to i32
    %c0_i32_21 = arith.constant 0 : i32
    %35 = arith.cmpi ne, %34, %c0_i32_21 : i32
    scf.if %35 {
      %c0_24 = arith.constant 0 : index
      %c0_25 = arith.constant 0 : index
      %39 = vector.load %arg9[%c0_24, %c0_25] : memref<8x128xf32, #tpu.memory_space<vmem>>, vector<8x128xf32>
      %cst_26 = arith.constant dense<0.000000e+00> : vector<8xf32>
      %40 = vector.multi_reduction <add>, %39, %cst_26 [1] : vector<8x128xf32> to vector<8xf32>
      %41 = vector.shape_cast %40 : vector<8xf32> to vector<8x1xf32>
      %cst_27 = arith.constant 3.125000e-02 : f32
      %42 = vector.broadcast %cst_27 : f32 to vector<8x1xf32>
      %43 = arith.mulf %41, %42 : vector<8x1xf32>
      %c0_28 = arith.constant 0 : index
      %c0_29 = arith.constant 0 : index
      %44 = vector.load %arg10[%c0_28, %c0_29] : memref<8x128xf32, #tpu.memory_space<vmem>>, vector<8x128xf32>
      %cst_30 = arith.constant dense<0.000000e+00> : vector<8xf32>
      %45 = vector.multi_reduction <add>, %44, %cst_30 [1] : vector<8x128xf32> to vector<8xf32>
      %46 = vector.shape_cast %45 : vector<8xf32> to vector<8x1xf32>
      %cst_31 = arith.constant 3.125000e-02 : f32
      %47 = vector.broadcast %cst_31 : f32 to vector<8x1xf32>
      %48 = arith.mulf %46, %47 : vector<8x1xf32>
      %49 = arith.mulf %43, %43 : vector<8x1xf32>
      %50 = arith.subf %48, %49 : vector<8x1xf32>
      %cst_32 = arith.constant 0.000000e+00 : f32
      %51 = vector.broadcast %cst_32 : f32 to vector<8x1xf32>
      %52 = arith.maximumf %50, %51 : vector<8x1xf32>
      %cst_33 = arith.constant 1.000000e-03 : f32
      %53 = vector.broadcast %cst_33 : f32 to vector<8x1xf32>
      %54 = arith.addf %52, %53 : vector<8x1xf32>
      %55 = math.rsqrt %54 : vector<8x1xf32>
      %c0_34 = arith.constant 0 : index
      %c0_35 = arith.constant 0 : index
      %56 = vector.load %arg6[%c0_34, %c0_35] : memref<8x1xf32, #tpu.memory_space<vmem>>, vector<8x1xf32>
      %57 = arith.mulf %55, %56 : vector<8x1xf32>
      %c0_36 = arith.constant 0 : index
      %c0_37 = arith.constant 0 : index
      %58 = vector.load %arg11[%c0_36, %c0_37] : memref<8x1xf32, #tpu.memory_space<vmem>>, vector<8x1xf32>
      tpu.vector_store %arg11[%c0_36, %c0_37], %57 {strides = array<i32>} : memref<8x1xf32, #tpu.memory_space<vmem>>, vector<8x1xf32>,
      %c0_38 = arith.constant 0 : index
      %c0_39 = arith.constant 0 : index
      %59 = vector.load %arg7[%c0_38, %c0_39] : memref<8x1xf32, #tpu.memory_space<vmem>>, vector<8x1xf32>
      %60 = arith.mulf %43, %57 : vector<8x1xf32>
      %61 = arith.subf %59, %60 : vector<8x1xf32>
      %c0_40 = arith.constant 0 : index
      %c0_41 = arith.constant 0 : index
      %62 = vector.load %arg12[%c0_40, %c0_41] : memref<8x1xf32, #tpu.memory_space<vmem>>, vector<8x1xf32>
      tpu.vector_store %arg12[%c0_40, %c0_41], %61 {strides = array<i32>} : memref<8x1xf32, #tpu.memory_space<vmem>>, vector<8x1xf32>,
    } else {
    }
    %c1_i32_22 = arith.constant 1 : i32
    %36 = arith.cmpi eq, %arg0, %c1_i32_22 : i32
    %37 = arith.extui %36 : i1 to i32
    %c0_i32_23 = arith.constant 0 : i32
    %38 = arith.cmpi ne, %37, %c0_i32_23 : i32
    scf.if %38 {
      %c0_24 = arith.constant 0 : index
      %c0_25 = arith.constant 0 : index
      %39 = vector.load %arg11[%c0_24, %c0_25] : memref<8x1xf32, #tpu.memory_space<vmem>>, vector<8x1xf32>
      %40 = vector.broadcast %39 : vector<8x1xf32> to vector<8x128xf32>
      %41 = arith.mulf %25, %40 : vector<8x128xf32>
      %c0_26 = arith.constant 0 : index
      %c0_27 = arith.constant 0 : index
      %42 = vector.load %arg12[%c0_26, %c0_27] : memref<8x1xf32, #tpu.memory_space<vmem>>, vector<8x1xf32>
      %43 = vector.broadcast %42 : vector<8x1xf32> to vector<8x128xf32>
      %44 = arith.addf %41, %43 : vector<8x128xf32>
      %c0_28 = arith.constant 0 : index
      %c0_29 = arith.constant 0 : index
      %c0_30 = arith.constant 0 : index
      %45 = vector.load %arg8[%c0_28, %c0_29, %c0_30] : memref<1x8x128xf32, #tpu.memory_space<vmem>>, vector<1x8x128xf32>
      %46 = vector.shape_cast %45 : vector<1x8x128xf32> to vector<8x128xf32>
      %47 = vector.shape_cast %44 : vector<8x128xf32> to vector<1x8x128xf32>
      tpu.vector_store %arg8[%c0_28, %c0_29, %c0_30], %47 {strides = array<i32>} : memref<1x8x128xf32, #tpu.memory_space<vmem>>, vector<1x8x128xf32>,
    } else {
    }
    return
  }
  func.func @transform_0(%arg0: i32, %arg1: i32, %arg2: i32) -> (i32, i32, i32) {
    %c0_i32 = arith.constant 0 : i32
    %c0_i32_0 = arith.constant 0 : i32
    return %arg1, %c0_i32, %arg2 : i32, i32, i32
  }
  func.func @transform_1(%arg0: i32, %arg1: i32, %arg2: i32) -> (i32, i32, i32) {
    %c1_i32 = arith.constant 1 : i32
    %0 = arith.addi %arg2, %c1_i32 : i32
    %c1_i32_0 = arith.constant 1 : i32
    %1 = arith.muli %0, %c1_i32_0 : i32
    %c0_i32 = arith.constant 0 : i32
    %c0_i32_1 = arith.constant 0 : i32
    return %arg1, %c0_i32, %1 : i32, i32, i32
  }
  func.func @transform_2(%arg0: i32, %arg1: i32, %arg2: i32) -> (i32, i32, i32) {
    %c0_i32 = arith.constant 0 : i32
    %c0_i32_0 = arith.constant 0 : i32
    %c0_i32_1 = arith.constant 0 : i32
    %c0_i32_2 = arith.constant 0 : i32
    return %c0_i32, %c0_i32_0, %c0_i32_1 : i32, i32, i32
  }
  func.func @transform_3(%arg0: i32, %arg1: i32, %arg2: i32) -> (i32, i32) {
    %c0_i32 = arith.constant 0 : i32
    %c0_i32_0 = arith.constant 0 : i32
    %c0_i32_1 = arith.constant 0 : i32
    return %c0_i32, %c0_i32_0 : i32, i32
  }
  func.func @transform_4(%arg0: i32, %arg1: i32, %arg2: i32) -> (i32, i32) {
    %c0_i32 = arith.constant 0 : i32
    %c0_i32_0 = arith.constant 0 : i32
    %c0_i32_1 = arith.constant 0 : i32
    return %c0_i32, %c0_i32_0 : i32, i32
  }
  func.func @transform_5(%arg0: i32, %arg1: i32, %arg2: i32) -> (i32, i32, i32) {
    %0 = arith.muli %arg0, %arg1 : i32
    %1 = arith.muli %arg0, %arg2 : i32
    %c0_i32 = arith.constant 0 : i32
    %c0_i32_0 = arith.constant 0 : i32
    return %0, %c0_i32, %1 : i32, i32, i32
  }
}

</mosaic_0001>

<llo_original>
// kernel: batch_norm_conv1d.1
$region0: #{batch_norm_conv1d.1}
  #allocation0 [shape = 'u32[]', space=smem, size = 0x4, offset = 0x4, fixed_abs, tag = 'smem constant byte address 0x4 - core index']
  #allocation1 [shape = 'u32[144,128]{1,0:T(1,128)}', space=vmem, size = 0x12000, scoped, tag = 'internal scratch']
  #allocation2 [shape = 'f32[8,128]{1,0:T(8,128)}', space=vmem, size = 0x1000, scoped, tag = 'scratch operand']
  #allocation3 [shape = 'f32[8,128]{1,0:T(8,128)}', space=vmem, size = 0x1000, scoped, tag = 'scratch operand']
  #allocation4 [shape = 'f32[8,1]{1,0:T(8,128)}', space=vmem, size = 0x1000, scoped, tag = 'scratch operand']
  #allocation5 [shape = 'f32[8,1]{1,0:T(8,128)}', space=vmem, size = 0x1000, scoped, tag = 'scratch operand']
  %s0 = inlined_call_operand.vmem [shape: f32[2,4,256], index: 0, kind: input, shape index: {}, may-alias: {0,1}]
  %s1 = inlined_call_operand.vmem [shape: f32[2,4,256], index: 1, kind: input, shape index: {}, may-alias: {0,1}]
  %s2 = inlined_call_operand.vmem [shape: f32[3,8,4], index: 2, kind: input, shape index: {}]
  %s3 = inlined_call_operand.vmem [shape: f32[8,1], index: 3, kind: input, shape index: {}]
  %s4 = inlined_call_operand.vmem [shape: f32[8,1], index: 4, kind: input, shape index: {}]
  %s5 = inlined_call_operand.hbm [shape: f32[2,8,128], index: 5, kind: output, shape index: {}]
  %s6 = sld [smem:[#allocation0]]
  $region69: #{batch_norm_conv1d.1} parent=0
    _
  %s8 = ssub.s32 1, %s6
  %s9 = scalar_select 0, %s8, %s6
  $region1: #{batch_norm_conv1d.1} parent=0
    #allocation6 [shape = 'u8[8192]{0}', space=vmem, size = 0x2000, scoped, tag = 'output window, operand 0']
    #allocation7 [shape = 's32[2]{0}', space=sflag, size = 0x8, scoped, tag = 'scoped memory for batch_norm_conv1d.1']
    %10 = vsyncpa [#allocation7], 0
    %s11 = scalar_lea.sflag [#allocation7], 1
    %12 = vsyncpa %s11, 0
    loop: start=0, step=1, limit=6
    $region2: #{batch_norm_conv1d.1} parent=1 // loop_pre_header
      _
    $region3: #{batch_norm_conv1d.1} parent=1 // loop_header
      %s14 = sphi 0, %s18
      %p15 = scmp.ge.s32.totalorder %s14, 6
      %s21 = sphi 0, %s40
      %s22 = sphi 0, %s36
      %s23 = sphi 0, %s32
      %s24 = sphi 0, %s21
      %s25 = sphi 0, %s22
      %s26 = sphi 0, %s23
      %s27 = sphi 0, %s24
      %s28 = sphi 0, %s25
      %s29 = sphi 0, %s26
      %s45 = sphi 0, %s47
      %s48 = sphi 0, %s45
      %s49 = sphi 0, %s48
      %s65 = sphi 0, %s49
      %s75 = sphi 0, %s77
      %s78 = sphi 0, %s75
      %s79 = sphi 0, %s78
      %s95 = sphi 0, %s79
      %s99 = sphi 0, %s99
      %s101 = sphi 0, %s99
      %s102 = sphi 0, %s101
      %s116 = sphi 0, %s102
      %s120 = sphi 0, %s120
      %s122 = sphi 0, %s120
      %s123 = sphi 0, %s122
      %s137 = sphi 0, %s123
      %s141 = sphi 0, %s141
      %s143 = sphi 0, %s141
      %s144 = sphi 0, %s143
      %s158 = sphi 0, %s144
      %s170 = sphi 0, %s172
      %s173 = sphi 0, %s170
      %s174 = sphi 0, %s173
      %s190 = sphi 0, %s174
    $region4: #{batch_norm_conv1d.1} parent=1 // loop_header_branch
      %17 = sbr.rel (%p15) target = $region8
    $region5: #{batch_norm_conv1d.1} parent=1 // loop_body
      %s19 = ssub.s32 %s14, 1
      %s20 = ssub.s32 %s14, 2
      %s30 = sadd.s32 1, %s23
      %p31 = scmp.ge.s32.totalorder %s30, 1
      %s32 = scalar_select %p31, 0, %s30
      %s33 = sadd.s32 1, %s22
      %s34 = scalar_select %p31, %s33, %s22
      %p35 = scmp.ge.s32.totalorder %s34, 2
      %s36 = scalar_select %p35, 0, %s34
      %s37 = sadd.s32 1, %s21
      %s38 = scalar_select %p35, %s37, %s21
      %p39 = scmp.ge.s32.totalorder %s38, 2
      %s40 = scalar_select %p39, 0, %s38
      %s41 = ssub.s32 %s22, %s36
      %s42 = ssub.s32 %s23, %s32
      %s43 = sor.u32 %s41, %s42
      %p44 = scmp.eq.s32.totalorder %s43, 0
      %s46 = sadd.s32 %s45, 1
      %s47 = scalar_select %p44, %s45, %s46
      %p50 = pneg %p44
      %p51 = scmp.eq.s32.totalorder %s14, 3
      %p52 = por %p50, %p51
      %p53 = scmp.ne.s32.totalorder %s45, %s48
      %p54 = scmp.eq.s32.totalorder %s14, 0
      %p55 = por %p53, %p54
      %p56 = scmp.ne.s32.totalorder %s45, %s48
      %p57 = scmp.eq.s32.totalorder %s19, 3
      %p58 = por %p56, %p57
      %p59 = scmp.ne.s32.totalorder %s48, %s49
      %p60 = scmp.eq.s32.totalorder %s19, 0
      %p61 = por %p59, %p60
      %p62 = scmp.ne.s32.totalorder %s48, %s49
      %p63 = scmp.eq.s32.totalorder %s20, 3
      %p64 = por %p62, %p63
      %p66 = scmp.ne.s32.totalorder %s49, %s65
      %p67 = scmp.eq.s32.totalorder %s20, 0
      %p68 = por %p66, %p67
      %s69 = sadd.s32 %s23, 1
      %s70 = sadd.s32 %s32, 1
      %s71 = ssub.s32 %s22, %s36
      %s72 = ssub.s32 %s69, %s70
      %s73 = sor.u32 %s71, %s72
      %p74 = scmp.eq.s32.totalorder %s73, 0
      %s76 = sadd.s32 %s75, 1
      %s77 = scalar_select %p74, %s75, %s76
      %p80 = pneg %p74
      %p81 = scmp.eq.s32.totalorder %s14, 3
      %p82 = por %p80, %p81
      %p83 = scmp.ne.s32.totalorder %s75, %s78
      %p84 = scmp.eq.s32.totalorder %s14, 0
      %p85 = por %p83, %p84
      %p86 = scmp.ne.s32.totalorder %s75, %s78
      %p87 = scmp.eq.s32.totalorder %s19, 3
      %p88 = por %p86, %p87
      %p89 = scmp.ne.s32.totalorder %s78, %s79
      %p90 = scmp.eq.s32.totalorder %s19, 0
      %p91 = por %p89, %p90
      %p92 = scmp.ne.s32.totalorder %s78, %s79
      %p93 = scmp.eq.s32.totalorder %s20, 3
      %p94 = por %p92, %p93
      %p96 = scmp.ne.s32.totalorder %s79, %s95
      %p97 = scmp.eq.s32.totalorder %s20, 0
      %p98 = por %p96, %p97
      %s100 = sadd.s32 %s99, 1
      %p103 = scmp.eq.s32.totalorder %s14, 3
      %p104 = scmp.ne.s32.totalorder %s99, %s101
      %p105 = scmp.eq.s32.totalorder %s14, 0
      %p106 = por %p104, %p105
      %p107 = scmp.ne.s32.totalorder %s99, %s101
      %p108 = scmp.eq.s32.totalorder %s19, 3
      %p109 = por %p107, %p108
      %p110 = scmp.ne.s32.totalorder %s101, %s102
      %p111 = scmp.eq.s32.totalorder %s19, 0
      %p112 = por %p110, %p111
      %p113 = scmp.ne.s32.totalorder %s101, %s102
      %p114 = scmp.eq.s32.totalorder %s20, 3
      %p115 = por %p113, %p114
      %p117 = scmp.ne.s32.totalorder %s102, %s116
      %p118 = scmp.eq.s32.totalorder %s20, 0
      %p119 = por %p117, %p118
      %s121 = sadd.s32 %s120, 1
      %p124 = scmp.eq.s32.totalorder %s14, 3
      %p125 = scmp.ne.s32.totalorder %s120, %s122
      %p126 = scmp.eq.s32.totalorder %s14, 0
      %p127 = por %p125, %p126
      %p128 = scmp.ne.s32.totalorder %s120, %s122
      %p129 = scmp.eq.s32.totalorder %s19, 3
      %p130 = por %p128, %p129
      %p131 = scmp.ne.s32.totalorder %s122, %s123
      %p132 = scmp.eq.s32.totalorder %s19, 0
      %p133 = por %p131, %p132
      %p134 = scmp.ne.s32.totalorder %s122, %s123
      %p135 = scmp.eq.s32.totalorder %s20, 3
      %p136 = por %p134, %p135
      %p138 = scmp.ne.s32.totalorder %s123, %s137
      %p139 = scmp.eq.s32.totalorder %s20, 0
      %p140 = por %p138, %p139
      %s142 = sadd.s32 %s141, 1
      %p145 = scmp.eq.s32.totalorder %s14, 3
      %p146 = scmp.ne.s32.totalorder %s141, %s143
      %p147 = scmp.eq.s32.totalorder %s14, 0
      %p148 = por %p146, %p147
      %p149 = scmp.ne.s32.totalorder %s141, %s143
      %p150 = scmp.eq.s32.totalorder %s19, 3
      %p151 = por %p149, %p150
      %p152 = scmp.ne.s32.totalorder %s143, %s144
      %p153 = scmp.eq.s32.totalorder %s19, 0
      %p154 = por %p152, %p153
      %p155 = scmp.ne.s32.totalorder %s143, %s144
      %p156 = scmp.eq.s32.totalorder %s20, 3
      %p157 = por %p155, %p156
      %p159 = scmp.ne.s32.totalorder %s144, %s158
      %p160 = scmp.eq.s32.totalorder %s20, 0
      %p161 = por %p159, %p160
      %s162 = smul.u32 %s21, %s22
      %s163 = smul.u32 %s21, %s23
      %s164 = smul.u32 %s40, %s36
      %s165 = smul.u32 %s40, %s32
      %s166 = ssub.s32 %s162, %s164
      %s167 = ssub.s32 %s163, %s165
      %s168 = sor.u32 %s166, %s167
      %p169 = scmp.eq.s32.totalorder %s168, 0
      %s171 = sadd.s32 %s170, 1
      %s172 = scalar_select %p169, %s170, %s171
      %p175 = pneg %p169
      %p176 = scmp.eq.s32.totalorder %s14, 3
      %p177 = por %p175, %p176
      %p178 = scmp.ne.s32.totalorder %s170, %s173
      %p179 = scmp.eq.s32.totalorder %s14, 0
      %p180 = por %p178, %p179
      %p181 = scmp.ne.s32.totalorder %s170, %s173
      %p182 = scmp.eq.s32.totalorder %s19, 3
      %p183 = por %p181, %p182
      %p184 = scmp.ne.s32.totalorder %s173, %s174
      %p185 = scmp.eq.s32.totalorder %s19, 0
      %p186 = por %p184, %p185
      %p187 = scmp.ne.s32.totalorder %s173, %s174
      %p188 = scmp.eq.s32.totalorder %s20, 3
      %p189 = por %p187, %p188
      %p191 = scmp.ne.s32.totalorder %s174, %s190
      %p192 = scmp.eq.s32.totalorder %s20, 0
      %p193 = por %p191, %p192
      %p194 = scmp.le.s32.totalorder 1, %s14
      %p195 = scmp.lt.s32.totalorder %s14, 5
      %p196 = pnand %p194, %p195
      %p197 = pneg %p196
      // Predicated region
      $region9: #{batch_norm_conv1d.1} parent=5 // pred_check
        _
      $region10: #{batch_norm_conv1d.1} parent=5 // pred_check_branch
        %199 = sbr.rel (%p196) target = $region12
      $region11: #{batch_norm_conv1d.1} parent=5 // pred_region
        %s200 = ssub.s32 %s14, 1
        // Predicated region
        $region13: #{batch_norm_conv1d.1} parent=11 // pred_check
          %p201 = pneg %p112
        $region14: #{batch_norm_conv1d.1} parent=11 // pred_check_branch
          %203 = sbr.rel (%p201) target = $region16
        $region15: #{batch_norm_conv1d.1} parent=11 // pred_region
          _
        $region16: #{batch_norm_conv1d.1} parent=11 // pred_fallthru
          _
        // Predicated region
        $region17: #{batch_norm_conv1d.1} parent=11 // pred_check
          %p204 = pneg %p133
        $region18: #{batch_norm_conv1d.1} parent=11 // pred_check_branch
          %206 = sbr.rel (%p204) target = $region20
        $region19: #{batch_norm_conv1d.1} parent=11 // pred_region
          _
        $region20: #{batch_norm_conv1d.1} parent=11 // pred_fallthru
          _
        // Predicated region
        $region21: #{batch_norm_conv1d.1} parent=11 // pred_check
          %p207 = pneg %p154
        $region22: #{batch_norm_conv1d.1} parent=11 // pred_check_branch
          %209 = sbr.rel (%p207) target = $region24
        $region23: #{batch_norm_conv1d.1} parent=11 // pred_region
          _
        $region24: #{batch_norm_conv1d.1} parent=11 // pred_fallthru
          _
      $region12: #{batch_norm_conv1d.1} parent=5 // pred_fallthru
        _
      %p210 = scmp.lt.s32.totalorder %s14, 4
      // Predicated region
      $region25: #{batch_norm_conv1d.1} parent=5 // pred_check
        %p211 = pneg %p210
      $region26: #{batch_norm_conv1d.1} parent=5 // pred_check_branch
        %213 = sbr.rel (%p211) target = $region28
      $region27: #{batch_norm_conv1d.1} parent=5 // pred_region
        // Predicated region
        $region29: #{batch_norm_conv1d.1} parent=27 // pred_check
          %p214 = pneg %p55
        $region30: #{batch_norm_conv1d.1} parent=27 // pred_check_branch
          %216 = sbr.rel (%p214) target = $region32
        $region31: #{batch_norm_conv1d.1} parent=27 // pred_region
          %p217 = scmp.lt.s32.totalorder %s22, 1
          %s218 = scalar_select %p217, %s22, 1
          %p219 = scmp.lt.s32.totalorder %s23, 1
          %s220 = scalar_select %p219, %s23, 1
          %s221 = smul.addr %s218, 2
          %s222 = sadd.s32 %s220, %s221
          %s223 = smul.addr %s222, 4
          %s224 = scalar_lea.vmem %s0, %s223
        $region32: #{batch_norm_conv1d.1} parent=27 // pred_fallthru
          _
        // Predicated region
        $region33: #{batch_norm_conv1d.1} parent=27 // pred_check
          %p225 = pneg %p85
        $region34: #{batch_norm_conv1d.1} parent=27 // pred_check_branch
          %227 = sbr.rel (%p225) target = $region36
        $region35: #{batch_norm_conv1d.1} parent=27 // pred_region
          %s228 = sadd.s32 %s23, 1
          %p229 = scmp.lt.s32.totalorder %s22, 1
          %s230 = scalar_select %p229, %s22, 1
          %p231 = scmp.lt.s32.totalorder %s228, 1
          %s232 = scalar_select %p231, %s228, 1
          %s233 = smul.addr %s230, 2
          %s234 = sadd.s32 %s232, %s233
          %s235 = smul.addr %s234, 4
          %s236 = scalar_lea.vmem %s1, %s235
          %s237 = sadd.s32 %s23, 1
        $region36: #{batch_norm_conv1d.1} parent=27 // pred_fallthru
          _
      $region28: #{batch_norm_conv1d.1} parent=5 // pred_fallthru
        _
      %p238 = scmp.le.s32.totalorder 1, %s14
      %p239 = scmp.lt.s32.totalorder %s14, 5
      %p240 = pnand %p238, %p239
      %p241 = pneg %p240
      // Predicated region
      $region37: #{batch_norm_conv1d.1} parent=5 // pred_check
        _
      $region38: #{batch_norm_conv1d.1} parent=5 // pred_check_branch
        %243 = sbr.rel (%p240) target = $region40
      $region39: #{batch_norm_conv1d.1} parent=5 // pred_region
        %s244 = ssub.s32 %s14, 1
        %p245 = scmp.lt.s32.totalorder %s25, 1
        %s246 = scalar_select %p245, %s25, 1
        %p247 = scmp.lt.s32.totalorder %s26, 1
        %s248 = scalar_select %p247, %s26, 1
        %s249 = smul.addr %s246, 2
        %s250 = sadd.s32 %s248, %s249
        %s251 = smul.addr %s250, 4
        %s252 = scalar_lea.vmem %s0, %s251
        %p253 = pneg %p61
        %p254 = pneg %p58
        %s255 = sadd.s32 %s26, 1
        %p256 = scmp.lt.s32.totalorder %s25, 1
        %s257 = scalar_select %p256, %s25, 1
        %p258 = scmp.lt.s32.totalorder %s255, 1
        %s259 = scalar_select %p258, %s255, 1
        %s260 = smul.addr %s257, 2
        %s261 = sadd.s32 %s259, %s260
        %s262 = smul.addr %s261, 4
        %s263 = scalar_lea.vmem %s1, %s262
        %p264 = pneg %p91
        %p265 = pneg %p88
        %p266 = pneg %p112
        %p267 = pneg %p109
        %p268 = pneg %p133
        %p269 = pneg %p130
        %p270 = pneg %p154
        %p271 = pneg %p151
        %p272 = pneg %p186
        %p273 = pneg %p183
        %s274 = sand.u32 %s173, 1
        %s275 = scalar_lea.sflag [#allocation7], %s274
        %s276 = sand.u32 %s173, 1
        %s277 = smul.addr %s276, 8
        %s278 = scalar_lea.vmem [#allocation6], %s277
        %p279 = scmp.lt.s32.totalorder %s25, 1
        %s280 = scalar_select %p279, %s25, 1
        %p281 = scmp.lt.s32.totalorder %s26, 1
        %s282 = scalar_select %p281, %s26, 1
        %s283 = smul.addr %s280, 2
        %s284 = sadd.s32 %s282, %s283
        %s285 = smul.addr %s284, 4
        %s286 = scalar_lea.vmem %s0, %s285
        %s287 = sadd.s32 %s26, 1
        %p288 = scmp.lt.s32.totalorder %s25, 1
        %s289 = scalar_select %p288, %s25, 1
        %p290 = scmp.lt.s32.totalorder %s287, 1
        %s291 = scalar_select %p290, %s287, 1
        %s292 = smul.addr %s289, 2
        %s293 = sadd.s32 %s291, %s292
        %s294 = smul.addr %s293, 4
        %s295 = scalar_lea.vmem %s1, %s294
        %s296 = sadd.s32 %s26, 1
        %s297 = smul.u32 %s24, %s25
        %s298 = smul.u32 %s24, %s26
        %p299 = scmp.eq.s32.totalorder %s24, 0
        %p300 = scmp.eq.s32.totalorder %s25, 0
        %p301 = pnand %p299, %p300
        %p302 = pneg %p301
        %p303 = scmp.eq.s32.totalorder %s26, 0
        %p304 = pnand %p302, %p303
        %p305 = pneg %p304
        // Predicated region
        $region41: #{batch_norm_conv1d.1} parent=39 // pred_check
          _
        $region42: #{batch_norm_conv1d.1} parent=39 // pred_check_branch
          %307 = sbr.rel (%p304) target = $region44
        $region43: #{batch_norm_conv1d.1} parent=39 // pred_region
          %308 = vst [vmem:[#allocation2] sm:$0xff] 0.0
          %309 = vst [vmem:[#allocation3] sm:$0xff] 0.0
        $region44: #{batch_norm_conv1d.1} parent=39 // pred_fallthru
          _
        %v310 = vld [vmem:[%s286] sm:$0xf]
        %v311 = vld [vmem:[%s295] sm:$0xf]
        %v312 = vld [vmem:[%s2] sm:$0xff]
        %s313 = scalar_lea.vmem %s2, 8
        %v314 = vld [vmem:[%s313] sm:$0xff]
        %317 = vrot.lane.b32.xlu0 %v310, 127
        %v318 = vpop.permute.xlu0 %317
        %319 = vrot.lane.b32.xlu0 %v311, 127
        %v320 = vpop.permute.xlu0 %319
        %vm321 = vcmask 1039360
        %v322 = vsel %vm321, %v318, %v320
        %vm323 = vcmask 31744
        %v325 = vsel %vm323, %v314, 0
        %vm327 = vcmask 1043456
        %v328 = vsel %vm327, %v322, 0
        %330 = vmatprep.subr.mxu0 0.0
        %331 = vmatpush1.msra.mxu0 %v328
        %332 = vmatprep.subr.mxu0 0.0
        %333 = vmatpush1.msra.mxu0 0.0
        %334 = vmatprep.subr.mxu0 0.0
        %335 = vmatpush1.msra.mxu0 0.0
        %336 = vmatprep.subr.mxu0 0.0
        %337 = vmatpush1.msra.mxu0 0.0
        %338 = vmatprep.subr.mxu0 0.0
        %339 = vmatpush1.msra.mxu0 0.0
        %340 = vmatprep.subr.mxu0 0.0
        %341 = vmatpush1.msra.mxu0 0.0
        %342 = vmatprep.subr.mxu0 0.0
        %343 = vmatpush1.msra.mxu0 0.0
        %344 = vmatprep.subr.mxu0 0.0
        %345 = vmatpush1.msra.mxu0 0.0
        %346 = vmatprep.subr.mxu0 0.0
        %347 = vmatpush1.msra.mxu0 0.0
        %348 = vmatprep.subr.mxu0 0.0
        %349 = vmatpush1.msra.mxu0 0.0
        %350 = vmatprep.subr.mxu0 0.0
        %351 = vmatpush1.msra.mxu0 0.0
        %352 = vmatprep.subr.mxu0 0.0
        %353 = vmatpush1.msra.mxu0 0.0
        %354 = vmatprep.subr.mxu0 0.0
        %355 = vmatpush1.msra.mxu0 0.0
        %356 = vmatprep.subr.mxu0 0.0
        %357 = vmatpush1.msra.mxu0 0.0
        %358 = vmatprep.subr.mxu0 0.0
        %359 = vmatpush1.msra.mxu0 0.0
        %360 = vmatprep.subr.mxu0 0.0
        %361 = vmatpush1.msra.mxu0 0.0
        %362 = vmatprep.subr.mxu0 0.0
        %363 = vmatpush1.msra.mxu0 0.0
        %364 = vmatprep.subr.mxu0 0.0
        %365 = vmatpush1.msra.mxu0 0.0
        %366 = vmatprep.subr.mxu0 0.0
        %367 = vmatpush1.msra.mxu0 0.0
        %368 = vmatprep.subr.mxu0 0.0
        %369 = vmatpush1.msra.mxu0 0.0
        %370 = vmatprep.subr.mxu0 0.0
        %371 = vmatpush1.msra.mxu0 0.0
        %372 = vmatprep.subr.mxu0 0.0
        %373 = vmatpush1.msra.mxu0 0.0
        %374 = vmatprep.subr.mxu0 0.0
        %375 = vmatpush1.msra.mxu0 0.0
        %376 = vmatprep.subr.mxu0 0.0
        %377 = vmatpush1.msra.mxu0 0.0
        %378 = vmatprep.subr.mxu0 0.0
        %379 = vmatpush1.msra.mxu0 0.0
        %380 = vmatprep.subr.mxu0 0.0
        %381 = vmatpush1.msra.mxu0 0.0
        %382 = vmatprep.subr.mxu0 0.0
        %383 = vmatpush1.msra.mxu0 0.0
        %384 = vmatprep.subr.mxu0 0.0
        %385 = vmatpush1.msra.mxu0 0.0
        %386 = vmatprep.subr.mxu0 0.0
        %387 = vmatpush1.msra.mxu0 0.0
        %388 = vmatprep.subr.mxu0 0.0
        %389 = vmatpush1.msra.mxu0 0.0
        %390 = vmatprep.subr.mxu0 0.0
        %391 = vmatpush1.msra.mxu0 0.0
        %392 = vmatprep.subr.mxu0 0.0
        %393 = vmatpush1.msra.mxu0 0.0
        %394 = vmatprep.mubr.f32.mxu0 0.0
        %395 = vmatmul.mubr.f32.gmra.mrb[0].mxu0 %v325
        %v396 = vpop.f32.mrb[0].mxu0
        %v397 = vadd.f32 0.0, %v396
        %v398 = vpop.f32.mrb[0].mxu0
        %399 = vdwg.mxu0
        %v401 = vsel %vm323, %v312, 0
        %v403 = vsel %vm327, %v310, 0
        %405 = vmatprep.subr.mxu0 0.0
        %406 = vmatpush1.msra.mxu0 %v403
        %407 = vmatprep.subr.mxu0 0.0
        %408 = vmatpush1.msra.mxu0 0.0
        %409 = vmatprep.subr.mxu0 0.0
        %410 = vmatpush1.msra.mxu0 0.0
        %411 = vmatprep.subr.mxu0 0.0
        %412 = vmatpush1.msra.mxu0 0.0
        %413 = vmatprep.subr.mxu0 0.0
        %414 = vmatpush1.msra.mxu0 0.0
        %415 = vmatprep.subr.mxu0 0.0
        %416 = vmatpush1.msra.mxu0 0.0
        %417 = vmatprep.subr.mxu0 0.0
        %418 = vmatpush1.msra.mxu0 0.0
        %419 = vmatprep.subr.mxu0 0.0
        %420 = vmatpush1.msra.mxu0 0.0
        %421 = vmatprep.subr.mxu0 0.0
        %422 = vmatpush1.msra.mxu0 0.0
        %423 = vmatprep.subr.mxu0 0.0
        %424 = vmatpush1.msra.mxu0 0.0
        %425 = vmatprep.subr.mxu0 0.0
        %426 = vmatpush1.msra.mxu0 0.0
        %427 = vmatprep.subr.mxu0 0.0
        %428 = vmatpush1.msra.mxu0 0.0
        %429 = vmatprep.subr.mxu0 0.0
        %430 = vmatpush1.msra.mxu0 0.0
        %431 = vmatprep.subr.mxu0 0.0
        %432 = vmatpush1.msra.mxu0 0.0
        %433 = vmatprep.subr.mxu0 0.0
        %434 = vmatpush1.msra.mxu0 0.0
        %435 = vmatprep.subr.mxu0 0.0
        %436 = vmatpush1.msra.mxu0 0.0
        %437 = vmatprep.subr.mxu0 0.0
        %438 = vmatpush1.msra.mxu0 0.0
        %439 = vmatprep.subr.mxu0 0.0
        %440 = vmatpush1.msra.mxu0 0.0
        %441 = vmatprep.subr.mxu0 0.0
        %442 = vmatpush1.msra.mxu0 0.0
        %443 = vmatprep.subr.mxu0 0.0
        %444 = vmatpush1.msra.mxu0 0.0
        %445 = vmatprep.subr.mxu0 0.0
        %446 = vmatpush1.msra.mxu0 0.0
        %447 = vmatprep.subr.mxu0 0.0
        %448 = vmatpush1.msra.mxu0 0.0
        %449 = vmatprep.subr.mxu0 0.0
        %450 = vmatpush1.msra.mxu0 0.0
        %451 = vmatprep.subr.mxu0 0.0
        %452 = vmatpush1.msra.mxu0 0.0
        %453 = vmatprep.subr.mxu0 0.0
        %454 = vmatpush1.msra.mxu0 0.0
        %455 = vmatprep.subr.mxu0 0.0
        %456 = vmatpush1.msra.mxu0 0.0
        %457 = vmatprep.subr.mxu0 0.0
        %458 = vmatpush1.msra.mxu0 0.0
        %459 = vmatprep.subr.mxu0 0.0
        %460 = vmatpush1.msra.mxu0 0.0
        %461 = vmatprep.subr.mxu0 0.0
        %462 = vmatpush1.msra.mxu0 0.0
        %463 = vmatprep.subr.mxu0 0.0
        %464 = vmatpush1.msra.mxu0 0.0
        %465 = vmatprep.subr.mxu0 0.0
        %466 = vmatpush1.msra.mxu0 0.0
        %467 = vmatprep.subr.mxu0 0.0
        %468 = vmatpush1.msra.mxu0 0.0
        %469 = vmatprep.mubr.f32.mxu0 0.0
        %470 = vmatmul.mubr.f32.gmra.mrb[0].mxu0 %v401
        %v471 = vpop.f32.mrb[0].mxu0
        %v472 = vadd.f32 %v397, %v471
        %v473 = vpop.f32.mrb[0].mxu0
        %474 = vdwg.mxu0
        %s475 = scalar_lea.vmem %s2, 16
        %v476 = vld [vmem:[%s475] sm:$0xff]
        %477 = vrot.lane.b32.xlu0 %v310, 126
        %v478 = vpop.permute.xlu0 %477
        %479 = vrot.lane.b32.xlu0 %v311, 126
        %v480 = vpop.permute.xlu0 %479
        %vm481 = vcmask 1031168
        %v482 = vsel %vm481, %v478, %v480
        %v484 = vsel %vm323, %v476, 0
        %v486 = vsel %vm327, %v482, 0
        %488 = vmatprep.subr.mxu0 0.0
        %489 = vmatpush1.msra.mxu0 %v486
        %490 = vmatprep.subr.mxu0 0.0
        %491 = vmatpush1.msra.mxu0 0.0
        %492 = vmatprep.subr.mxu0 0.0
        %493 = vmatpush1.msra.mxu0 0.0
        %494 = vmatprep.subr.mxu0 0.0
        %495 = vmatpush1.msra.mxu0 0.0
        %496 = vmatprep.subr.mxu0 0.0
        %497 = vmatpush1.msra.mxu0 0.0
        %498 = vmatprep.subr.mxu0 0.0
        %499 = vmatpush1.msra.mxu0 0.0
        %500 = vmatprep.subr.mxu0 0.0
        %501 = vmatpush1.msra.mxu0 0.0
        %502 = vmatprep.subr.mxu0 0.0
        %503 = vmatpush1.msra.mxu0 0.0
        %504 = vmatprep.subr.mxu0 0.0
        %505 = vmatpush1.msra.mxu0 0.0
        %506 = vmatprep.subr.mxu0 0.0
        %507 = vmatpush1.msra.mxu0 0.0
        %508 = vmatprep.subr.mxu0 0.0
        %509 = vmatpush1.msra.mxu0 0.0
        %510 = vmatprep.subr.mxu0 0.0
        %511 = vmatpush1.msra.mxu0 0.0
        %512 = vmatprep.subr.mxu0 0.0
        %513 = vmatpush1.msra.mxu0 0.0
        %514 = vmatprep.subr.mxu0 0.0
        %515 = vmatpush1.msra.mxu0 0.0
        %516 = vmatprep.subr.mxu0 0.0
        %517 = vmatpush1.msra.mxu0 0.0
        %518 = vmatprep.subr.mxu0 0.0
        %519 = vmatpush1.msra.mxu0 0.0
        %520 = vmatprep.subr.mxu0 0.0
        %521 = vmatpush1.msra.mxu0 0.0
        %522 = vmatprep.subr.mxu0 0.0
        %523 = vmatpush1.msra.mxu0 0.0
        %524 = vmatprep.subr.mxu0 0.0
        %525 = vmatpush1.msra.mxu0 0.0
        %526 = vmatprep.subr.mxu0 0.0
        %527 = vmatpush1.msra.mxu0 0.0
        %528 = vmatprep.subr.mxu0 0.0
        %529 = vmatpush1.msra.mxu0 0.0
        %530 = vmatprep.subr.mxu0 0.0
        %531 = vmatpush1.msra.mxu0 0.0
        %532 = vmatprep.subr.mxu0 0.0
        %533 = vmatpush1.msra.mxu0 0.0
        %534 = vmatprep.subr.mxu0 0.0
        %535 = vmatpush1.msra.mxu0 0.0
        %536 = vmatprep.subr.mxu0 0.0
        %537 = vmatpush1.msra.mxu0 0.0
        %538 = vmatprep.subr.mxu0 0.0
        %539 = vmatpush1.msra.mxu0 0.0
        %540 = vmatprep.subr.mxu0 0.0
        %541 = vmatpush1.msra.mxu0 0.0
        %542 = vmatprep.subr.mxu0 0.0
        %543 = vmatpush1.msra.mxu0 0.0
        %544 = vmatprep.subr.mxu0 0.0
        %545 = vmatpush1.msra.mxu0 0.0
        %546 = vmatprep.subr.mxu0 0.0
        %547 = vmatpush1.msra.mxu0 0.0
        %548 = vmatprep.subr.mxu0 0.0
        %549 = vmatpush1.msra.mxu0 0.0
        %550 = vmatprep.subr.mxu0 0.0
        %551 = vmatpush1.msra.mxu0 0.0
        %552 = vmatprep.mubr.f32.mxu0 0.0
        %553 = vmatmul.mubr.f32.gmra.mrb[0].mxu0 %v484
        %v554 = vpop.f32.mrb[0].mxu0
        %v555 = vadd.f32 0.0, %v554
        %v556 = vpop.f32.mrb[0].mxu0
        %557 = vdwg.mxu0
        %v558 = vadd.f32 %v472, %v555
        // Predicated region
        $region45: #{batch_norm_conv1d.1} parent=39 // pred_check
          %p559 = pneg %p299
        $region46: #{batch_norm_conv1d.1} parent=39 // pred_check_branch
          %561 = sbr.rel (%p559) target = $region48
        $region47: #{batch_norm_conv1d.1} parent=39 // pred_region
          %s562 = smul.u32 %s26, 128
          %s563 = ssub.s32 16, %s562
          %v564 = vlaneseq
          %v565 = vand.u32 %v564, 127
          %v566 = vstv %s563
          %vm567 = vcmp.lt.s32.totalorder %v565, %v566
          %v568 = vsel %vm567, %v558, 0.0
          %v569 = vmul.f32 %v568, %v568
          %v570 = vld [vmem:[#allocation2] sm:$0xff]
          %v571 = vadd.f32 %v570, %v568
          %572 = vst [vmem:[#allocation2] sm:$0xff] %v571
          %v573 = vld [vmem:[#allocation3] sm:$0xff]
          %v574 = vadd.f32 %v573, %v569
          %575 = vst [vmem:[#allocation3] sm:$0xff] %v574
        $region48: #{batch_norm_conv1d.1} parent=39 // pred_fallthru
          _
        %p576 = scmp.eq.s32.totalorder %s24, 1
        %p577 = pnand %p576, %p300
        %p578 = pneg %p577
        %p579 = pnand %p578, %p303
        %p580 = pneg %p579
        // Predicated region
        $region49: #{batch_norm_conv1d.1} parent=39 // pred_check
          _
        $region50: #{batch_norm_conv1d.1} parent=39 // pred_check_branch
          %582 = sbr.rel (%p579) target = $region52
        $region51: #{batch_norm_conv1d.1} parent=39 // pred_region
          %v583 = vld [vmem:[#allocation2] sm:$0xff]
          %584 = vadd.xlane.f32.xlu0 %v583
          %v585 = vpop.xlane.xlu0 %584
          %v586 = vmul.f32 %v585, 0.03125
          %v587 = vld [vmem:[#allocation3] sm:$0xff]
          %588 = vadd.xlane.f32.xlu0 %v587
          %v589 = vpop.xlane.xlu0 %588
          %v590 = vmul.f32 %v589, 0.03125
          %v591 = vmul.f32 %v586, %v586
          %v592 = vsub.f32 %v590, %v591
          %v593 = vmax.f32 %v592, 0.0
          %v594 = vadd.f32 %v593, 0.001
          %v595 = vrsqrt.pop %v594
          %v596 = vld [vmem:[%s3] sm:$0xff]
          %v597 = vmul.f32 %v595, %v596
          %vm598 = vcmask 7168
          %599 = vst.msk [vmem:[#allocation4] sm:$0xff] %vm598, %v597
          %v600 = vld [vmem:[%s4] sm:$0xff]
          %v601 = vmul.f32 %v586, %v597
          %v602 = vsub.f32 %v600, %v601
          %603 = vst.msk [vmem:[#allocation5] sm:$0xff] %vm598, %v602
        $region52: #{batch_norm_conv1d.1} parent=39 // pred_fallthru
          _
        // Predicated region
        $region53: #{batch_norm_conv1d.1} parent=39 // pred_check
          %p604 = pneg %p576
        $region54: #{batch_norm_conv1d.1} parent=39 // pred_check_branch
          %606 = sbr.rel (%p604) target = $region56
        $region55: #{batch_norm_conv1d.1} parent=39 // pred_region
          %v607 = vld [vmem:[#allocation4] sm:$0xff]
          %609 = vset.pattern.permute.xlu0 0
          %610 = vperm.xlu0 %609, %v607
          %v611 = vpop.permute.xlu0 %610
          %v613 = vmul.f32 %v558, %v611
          %v614 = vld [vmem:[#allocation5] sm:$0xff]
          %616 = vset.pattern.permute.xlu0 0
          %617 = vperm.xlu0 %616, %v614
          %v618 = vpop.permute.xlu0 %617
          %v620 = vadd.f32 %v613, %v618
          %621 = vst [vmem:[%s278] sm:$0xff] %v620
        $region56: #{batch_norm_conv1d.1} parent=39 // pred_fallthru
          _
        %s622 = sand.u32 %s173, 1
        %s623 = scalar_lea.sflag [#allocation7], %s622
        %s624 = sand.u32 %s173, 1
        %s625 = smul.addr %s624, 8
        %s626 = scalar_lea.vmem [#allocation6], %s625
        // Predicated region
        $region57: #{batch_norm_conv1d.1} parent=39 // pred_check
          %p627 = pneg %p183
        $region58: #{batch_norm_conv1d.1} parent=39 // pred_check_branch
          %629 = sbr.rel (%p627) target = $region60
        $region59: #{batch_norm_conv1d.1} parent=39 // pred_region
          %s630 = smul.u32 %s24, %s25
          %s631 = smul.u32 %s24, %s26
          %s633 = ssub.s32 128, 128
          %634 = vsyncadd %s623, %s633
          %s635 = sadd.s32 %s631, %s630
          %s636 = smul.addr %s635, 128
          %s637 = scalar_lea.hbm %s5, %s636
          %s639 = sshll.u32 %s626, 4
          %s640 = int_to_ptr.vmem [resolvable:$true] %s639
          %642 = dma.vmem_to_hbm [thread:$0]  %s640, 128, %s637, %s623
        $region60: #{batch_norm_conv1d.1} parent=39 // pred_fallthru
          _
      $region40: #{batch_norm_conv1d.1} parent=5 // pred_fallthru
        _
      %p643 = scmp.le.s32.totalorder 2, %s14
      // Predicated region
      $region61: #{batch_norm_conv1d.1} parent=5 // pred_check
        %p644 = pneg %p643
      $region62: #{batch_norm_conv1d.1} parent=5 // pred_check_branch
        %646 = sbr.rel (%p644) target = $region64
      $region63: #{batch_norm_conv1d.1} parent=5 // pred_region
        %s647 = ssub.s32 %s14, 2
        // Predicated region
        $region65: #{batch_norm_conv1d.1} parent=63 // pred_check
          %p648 = pneg %p189
        $region66: #{batch_norm_conv1d.1} parent=63 // pred_check_branch
          %650 = sbr.rel (%p648) target = $region68
        $region67: #{batch_norm_conv1d.1} parent=63 // pred_region
          %s651 = sand.u32 %s174, 1
          %s652 = scalar_lea.sflag [#allocation7], %s651
          %s653 = sand.u32 %s174, 1
          %s654 = smul.addr %s653, 8
          %s655 = scalar_lea.vmem [#allocation6], %s654
          %656 = dma.done %s652, 128
        $region68: #{batch_norm_conv1d.1} parent=63 // pred_fallthru
          _
      $region64: #{batch_norm_conv1d.1} parent=5 // pred_fallthru
        _
    $region6: #{batch_norm_conv1d.1} parent=1 // loop_footer
      %s18 = sadd.s32 1, %s14
    $region7: #{batch_norm_conv1d.1} parent=1 // loop_footer_branch
      %13 = sbr.rel target = $region3
    $region8: #{batch_norm_conv1d.1} parent=1 // loop_exit
      _
    %657 = vsyncpa [#allocation7], 1
    %s658 = scalar_lea.sflag [#allocation7], 1
    %659 = vsyncpa %s658, 1

</llo_original>
